<compile_context>
chip_gen: v5e
topology: v5e:2x2
jax: 0.10.0
libtpu: 0.0.40
codegen_flags: <defaults>
</compile_context>

<pallas_src>
import functools

import jax
import jax.numpy as jnp
from jax.experimental import pallas as pl
from jax.experimental.pallas import tpu as pltpu


_MAX_BLOCK_BYTES = 4 * 1024 * 1024  # per-block VMEM budget (safe on v5e/v6e/v7x)


def _fused_leaky_relu_kernel(x_ref, b_ref, o_ref, *, negative_slope, scale):
    # x_ref: (tile_rows, tile_hw); b_ref: (tile_rows, 1) per-row bias column.
    x = x_ref[...] + b_ref[...]
    pos = jnp.asarray(scale, x.dtype)
    neg = jnp.asarray(negative_slope * scale, x.dtype)
    # Fold the scale into the select: one multiply total.
    o_ref[...] = (x * jnp.where(x >= 0, pos, neg)).astype(o_ref.dtype)


def _pick_tiles(rows, hw, itemsize):
    """Pick (tile_rows, tile_hw) honoring the (8, 128) tiling constraint."""
    # Lane (last) dim: multiple of 128, or the full extent if hw % 128 != 0.
    if hw % 128 == 0:
        tile_hw = min(hw, 2048)
    else:
        tile_hw = hw
    # Sublane dim: multiple of 8, or the full extent if rows % 8 != 0.
    if rows % 8 == 0:
        tile_rows = min(rows, 256)
    else:
        tile_rows = rows
    # Shrink (where legal) to respect the per-block VMEM budget.
    while (tile_rows * tile_hw * itemsize > _MAX_BLOCK_BYTES
           and tile_hw >= 256 and tile_hw % 128 == 0):
        tile_hw = max(128, ((tile_hw // 2) // 128) * 128)
    while (tile_rows * tile_hw * itemsize > _MAX_BLOCK_BYTES
           and tile_rows >= 16 and tile_rows % 8 == 0):
        tile_rows = max(8, ((tile_rows // 2) // 8) * 8)
    return tile_rows, tile_hw


def fused_leaky_relu(x, bias, negative_slope=0.2, scale=2.0 ** 0.5):
    """x: (B, C, *spatial); bias: (C,). Returns same shape/dtype as x."""
    assert x.ndim >= 2, "expected (B, C, ...) input"
    B, C = x.shape[0], x.shape[1]
    assert bias.shape == (C,)

    spatial = 1
    for d in x.shape[2:]:
        spatial *= d
    rows, hw = B * C, spatial

    # Free (contiguous) reshape: channels stay on the sublane/grid axis,
    # spatial goes to the lane axis.
    x_rows = x.reshape(rows, hw)
    # Tiny per-row bias column: row r of (B*C) has channel r % C.
    bias_col = jnp.broadcast_to(
        bias.astype(x.dtype)[None, :], (B, C)).reshape(rows, 1)

    tile_rows, tile_hw = _pick_tiles(rows, hw, x.dtype.itemsize)
    grid = (pl.cdiv(rows, tile_rows), pl.cdiv(hw, tile_hw))

    kernel = functools.partial(
        _fused_leaky_relu_kernel,
        negative_slope=float(negative_slope),
        scale=float(scale),
    )

    out_rows = pl.pallas_call(
        kernel,
        out_shape=jax.ShapeDtypeStruct((rows, hw), x.dtype),
        grid=grid,
        in_specs=[
            pl.BlockSpec((tile_rows, tile_hw), lambda i, j: (i, j)),
            pl.BlockSpec((tile_rows, 1), lambda i, j: (i, 0)),
        ],
        out_specs=pl.BlockSpec((tile_rows, tile_hw), lambda i, j: (i, j)),
        compiler_params=pltpu.CompilerParams(
            dimension_semantics=("parallel", "parallel"),
            vmem_limit_bytes=32 * 1024 * 1024,
        ),
    )(x_rows, bias_col)

    # Free reshape back to the original layout.
    return out_rows.reshape(x.shape)


class FusedLeakyReLU:
    """JAX/Pallas counterpart of the PyTorch FusedLeakyReLU module."""

    def __init__(self, channel, negative_slope=0.2, scale=2.0 ** 0.5,
                 key=None):
        # PyTorch init is zeros; use a small deterministic non-zero bias when
        # a key is given so the bias-add path is actually exercised.
        if key is None:
            self.bias = jnp.zeros((channel,), jnp.float32)
        else:
            self.bias = 0.1 * jax.random.normal(key, (channel,), jnp.float32)
        self.negative_slope = negative_slope
        self.scale = scale

    def __call__(self, x):
        return fused_leaky_relu(x, self.bias, self.negative_slope, self.scale)


def _reference(x, bias, negative_slope=0.2, scale=2.0 ** 0.5):
    xb = x + bias.reshape(1, -1, 1, 1)
    return jnp.where(xb >= 0.0, xb, xb * negative_slope) * scale


if __name__ == "__main__":
    key = jax.random.PRNGKey(0)
    kx, kb = jax.random.split(key)

    B, C, H, W = 2, 4, 16, 16
    x = jax.random.normal(kx, (B, C, H, W), jnp.float32)

    mod = FusedLeakyReLU(C, key=kb)
    out = mod(x)
    out = jax.block_until_ready(out)

    ref = _reference(x, mod.bias, mod.negative_slope, mod.scale)
    assert out.shape == (B, C, H, W)
    assert out.dtype == x.dtype
    assert jnp.allclose(out, ref, atol=1e-5, rtol=1e-5), "mismatch vs reference"

    print("KERNEL_OK")
</pallas_src>

<mosaic_0001>
module attributes {stable_mosaic.version = 11 : i64} {
  func.func @_fused_leaky_relu_kernel(%arg0: i32, %arg1: i32, %arg2: memref<8x256xf32, #tpu.memory_space<vmem>>, %arg3: memref<8x1xf32, #tpu.memory_space<vmem>>, %arg4: memref<8x256xf32, #tpu.memory_space<vmem>>) attributes {dimension_semantics = [#tpu.dimension_semantics<parallel>, #tpu.dimension_semantics<parallel>], iteration_bounds = array<i64: 1, 1>, scalar_prefetch = 0 : i64, scratch_operands = 0 : i64, tpu.core_type = #tpu.core_type<tc>, window_params = [{transform_indices = @transform_0, window_bounds = array<i64: 8, 256>}, {transform_indices = @transform_1, window_bounds = array<i64: 8, 1>}, {transform_indices = @transform_2, window_bounds = array<i64: 8, 256>}]} {
    %c0 = arith.constant 0 : index
    %c0_0 = arith.constant 0 : index
    %0 = vector.load %arg2[%c0, %c0_0] : memref<8x256xf32, #tpu.memory_space<vmem>>, vector<8x256xf32>
    %c0_1 = arith.constant 0 : index
    %c0_2 = arith.constant 0 : index
    %1 = vector.load %arg3[%c0_1, %c0_2] : memref<8x1xf32, #tpu.memory_space<vmem>>, vector<8x1xf32>
    %2 = vector.broadcast %1 : vector<8x1xf32> to vector<8x256xf32>
    %3 = arith.addf %0, %2 : vector<8x256xf32>
    %cst = arith.constant 0.000000e+00 : f32
    %4 = vector.broadcast %cst : f32 to vector<8x256xf32>
    %5 = arith.cmpf oge, %3, %4 : vector<8x256xf32>
    %cst_3 = arith.constant 1.41421354 : f32
    %cst_4 = arith.constant 0.282842726 : f32
    %6 = vector.broadcast %cst_3 : f32 to vector<8x256xf32>
    %7 = vector.broadcast %cst_4 : f32 to vector<8x256xf32>
    %8 = arith.select %5, %6, %7 : vector<8x256xi1>, vector<8x256xf32>
    %9 = arith.mulf %3, %8 : vector<8x256xf32>
    %c0_5 = arith.constant 0 : index
    %c0_6 = arith.constant 0 : index
    %10 = vector.load %arg4[%c0_5, %c0_6] : memref<8x256xf32, #tpu.memory_space<vmem>>, vector<8x256xf32>
    tpu.vector_store %arg4[%c0_5, %c0_6], %9 {strides = array<i32>} : memref<8x256xf32, #tpu.memory_space<vmem>>, vector<8x256xf32>,
    return
  }
  func.func @transform_0(%arg0: i32, %arg1: i32) -> (i32, i32) {
    %c0_i32 = arith.constant 0 : i32
    return %arg0, %arg1 : i32, i32
  }
  func.func @transform_1(%arg0: i32, %arg1: i32) -> (i32, i32) {
    %c0_i32 = arith.constant 0 : i32
    %c0_i32_0 = arith.constant 0 : i32
    return %arg0, %c0_i32 : i32, i32
  }
  func.func @transform_2(%arg0: i32, %arg1: i32) -> (i32, i32) {
    %c0_i32 = arith.constant 0 : i32
    return %arg0, %arg1 : i32, i32
  }
}

</mosaic_0001>

<llo_original>
// kernel: tpu_custom_call.1
$region0: #{tpu_custom_call.1}
  #allocation0 [shape = 'u32[]', space=smem, size = 0x4, offset = 0x4, fixed_abs, tag = 'smem constant byte address 0x4 - core index']
  #allocation1 [shape = 'u32[72,128]{1,0:T(1,128)}', space=vmem, size = 0x9000, scoped, tag = 'internal scratch']
  %s0 = inlined_call_operand.hbm [shape: f32[8,256], index: 0, kind: input, shape index: {}]
  %s1 = inlined_call_operand.vmem [shape: f32[8,1], index: 1, kind: input, shape index: {}]
  %s2 = inlined_call_operand.hbm [shape: f32[8,256], index: 2, kind: output, shape index: {}]
  %s3 = sld [smem:[#allocation0]]
  $region22: #{tpu_custom_call.1} parent=0
    _
  %s5 = ssub.s32 1, %s3
  %s6 = scalar_select 0, %s5, %s3
  $region1: #{tpu_custom_call.1} parent=0
    #allocation2 [shape = 'u8[8192]{0}', space=vmem, size = 0x2000, scoped, tag = 'input window, operand 0, single buffered']
    #allocation3 [shape = 's32[1]{0}', space=sflag, size = 0x4, scoped, tag = 'scoped memory for tpu_custom_call.1']
    #allocation4 [shape = 's32[1]{0}', space=sflag, size = 0x4, scoped, tag = 'scoped memory for tpu_custom_call.1']
    #allocation5 [shape = 'u8[8192]{0}', space=vmem, size = 0x2000, scoped, tag = 'output window, operand 0, single buffered']
    %7 = vsyncpa [#allocation3], 0
    %8 = vsyncpa [#allocation4], 0
    // Predicated region
    $region2: #{tpu_custom_call.1} parent=1 // pred_check
      _
    $region3: #{tpu_custom_call.1} parent=1 // pred_check_branch
      %10 = sbr.rel (0) target = $region5
    $region4: #{tpu_custom_call.1} parent=1 // pred_region
      %12 = vsyncadd [#allocation3], 0
      %s14 = sshll.u32 %s0, 4
      %s15 = int_to_ptr.hbm [resolvable:$true] %s14
      %s16 = sshll.u32 [#allocation2], 4
      %s17 = int_to_ptr.vmem [resolvable:$true] %s16
      %19 = dma.hbm_to_vmem [thread:$0]  %s15, 256, %s17, [#allocation3]
    $region5: #{tpu_custom_call.1} parent=1 // pred_fallthru
      _
    // Predicated region
    $region6: #{tpu_custom_call.1} parent=1 // pred_check
      _
    $region7: #{tpu_custom_call.1} parent=1 // pred_check_branch
      %21 = sbr.rel (0) target = $region9
    $region8: #{tpu_custom_call.1} parent=1 // pred_region
      _
    $region9: #{tpu_custom_call.1} parent=1 // pred_fallthru
      _
    // Predicated region
    $region10: #{tpu_custom_call.1} parent=1 // pred_check
      _
    $region11: #{tpu_custom_call.1} parent=1 // pred_check_branch
      %23 = sbr.rel (0) target = $region13
    $region12: #{tpu_custom_call.1} parent=1 // pred_region
      %25 = dma.done [#allocation3], 256
    $region13: #{tpu_custom_call.1} parent=1 // pred_fallthru
      _
    %v26 = vld [vmem:[#allocation2] sm:$0xff]
    %v27 = vld [vmem:[#allocation2 + $0x8] sm:$0xff]
    %v28 = vld [vmem:[%s1] sm:$0xff]
    %30 = vset.pattern.permute.xlu0 0
    %31 = vperm.xlu0 %30, %v28
    %v32 = vpop.permute.xlu0 %31
    %v34 = vadd.f32 %v26, %v32
    %v35 = vadd.f32 %v27, %v32
    %vm36 = vcmp.ge.f32.partialorder %v34, 0.0
    %vm37 = vcmp.ge.f32.partialorder %v35, 0.0
    %v38 = vsel %vm36, 1.4142135, 0.28284273
    %v39 = vsel %vm37, 1.4142135, 0.28284273
    %v40 = vmul.f32 %v34, %v38
    %v41 = vmul.f32 %v35, %v39
    %42 = vst [vmem:[#allocation5] sm:$0xff] %v40
    %43 = vst [vmem:[#allocation5 + $0x8] sm:$0xff] %v41
    // Predicated region
    $region14: #{tpu_custom_call.1} parent=1 // pred_check
      _
    $region15: #{tpu_custom_call.1} parent=1 // pred_check_branch
      %45 = sbr.rel (0) target = $region17
    $region16: #{tpu_custom_call.1} parent=1 // pred_region
      %47 = vsyncadd [#allocation4], 0
      %s49 = sshll.u32 [#allocation5], 4
      %s50 = int_to_ptr.vmem [resolvable:$true] %s49
      %s51 = sshll.u32 %s2, 4
      %s52 = int_to_ptr.hbm [resolvable:$true] %s51
      %54 = dma.vmem_to_hbm [thread:$0]  %s50, 256, %s52, [#allocation4]
    $region17: #{tpu_custom_call.1} parent=1 // pred_fallthru
      _
    // Predicated region
    $region18: #{tpu_custom_call.1} parent=1 // pred_check
      _
    $region19: #{tpu_custom_call.1} parent=1 // pred_check_branch
      %56 = sbr.rel (0) target = $region21
    $region20: #{tpu_custom_call.1} parent=1 // pred_region
      %58 = dma.done [#allocation4], 256
    $region21: #{tpu_custom_call.1} parent=1 // pred_fallthru
      _
    %59 = vsyncpa [#allocation3], 1
    %60 = vsyncpa [#allocation4], 1

</llo_original>
